<compile_context>
chip_gen: v6e
topology: v6e:2x2x1
jax: 0.10.0
libtpu: 0.0.40
codegen_flags: <defaults>
</compile_context>

<pallas_src>
import jax
import jax.numpy as jnp
from jax.experimental import pallas as pl
from jax.experimental.pallas import tpu as pltpu


def _cnn_regression_kernel(xw_ref, wc_ref, bc_ref, w1_ref, b1_ref, w2_ref,
                           b2_ref, out_ref):
    """
    xw_ref : (2, N, Lh*K*C)  im2col windows; index 0 = even conv output
                             positions, index 1 = odd positions.
    wc_ref : (Lh*K*C, Lh*H)  block-diagonal conv weight kron(I_Lh, Wc).
    bc_ref : (1, Lh*H)       conv bias tiled per pooled position.
    w1_ref : (Lh*H, hidden)  fc1 weight permuted to lane order l*H + h
                             (PyTorch flatten order is h*Lh + l).
    b1_ref : (1, hidden)
    w2_ref : (hidden, out_dim)
    b2_ref : (1, out_dim)
    out_ref: (N, out_dim)
    """
    wc = wc_ref[...]
    bc = bc_ref[...]

    # conv1d + bias + ReLU at even / odd output positions: one full-batch
    # matmul per parity (contraction depth Lh*K*C).
    he = jnp.maximum(
        jnp.dot(xw_ref[0], wc, preferred_element_type=jnp.float32) + bc, 0.0)
    ho = jnp.maximum(
        jnp.dot(xw_ref[1], wc, preferred_element_type=jnp.float32) + bc, 0.0)

    # MaxPool1d(kernel_size=2): pure elementwise max of the two parities,
    # result already laid out as the fc1 flattened input (N, Lh*H).
    pooled = jnp.maximum(he, ho)

    # fc1 + ReLU: single (N, Lh*H) x (Lh*H, hidden) matmul.
    z = jnp.maximum(
        jnp.dot(pooled, w1_ref[...], preferred_element_type=jnp.float32)
        + b1_ref[...], 0.0)

    # TODO(synk): training-mode dropout (RNG masking) not implemented;
    #             eval-mode dropout is the identity.

    # fc2 batched over N, single direct store.
    out_ref[...] = (jnp.dot(z, w2_ref[...], preferred_element_type=jnp.float32)
                    + b2_ref[...])


def cnn_regression_forward(x, params):
    """x: (N, C, L) float32 in PyTorch NCL layout. Returns (N, out_dim)."""
    wc, bc, w1, b1, w2, b2 = params
    x = x.astype(jnp.float32)

    N, C, L = x.shape
    H, Cw, K = wc.shape
    assert Cw == C
    # padding=K//2 only reproduces PyTorch's length-preserving conv for odd K.
    assert K % 2 == 1, "kernel_size must be odd for this kernel"
    pad = K // 2
    Lh = L // 2
    hidden = w1.shape[0]
    out_dim = w2.shape[0]
    assert w1.shape[1] == H * Lh, "fc1 in_features must equal hidden_dim*(input_dim//2)"

    # ---- layout plumbing (plain JAX / XLA) ----
    xp = jnp.pad(x, ((0, 0), (0, 0), (pad, pad)))                 # (N, C, Lp)
    x_nlc = jnp.transpose(xp, (0, 2, 1))                          # (N, Lp, C)
    # im2col windows: win[n, l, k, c] = x_pad[n, c, l + k]
    win = jnp.stack([x_nlc[:, k:k + L, :] for k in range(K)], axis=2)  # (N, L, K, C)
    xe = win[:, 0:2 * Lh:2].reshape(N, Lh * K * C)                # even positions
    xo = win[:, 1:2 * Lh:2].reshape(N, Lh * K * C)                # odd positions
    xw = jnp.stack([xe, xo], axis=0)                              # (2, N, Lh*K*C)

    # conv weight -> (K*C, H) matmul form, block-diagonal over pooled positions
    wc_mat = jnp.transpose(wc.astype(jnp.float32), (2, 1, 0)).reshape(K * C, H)
    wc_bd = jnp.kron(jnp.eye(Lh, dtype=jnp.float32), wc_mat)      # (Lh*K*C, Lh*H)
    bc_t = jnp.tile(bc.astype(jnp.float32).reshape(1, H), (1, Lh))  # (1, Lh*H)

    # fc1 weight: PyTorch flatten of (H, Lh) is h*Lh + l; our lanes are l*H + h.
    w1f = jnp.transpose(w1.astype(jnp.float32).reshape(hidden, H, Lh),
                        (2, 1, 0)).reshape(Lh * H, hidden)        # (Lh*H, hidden)
    b1_2 = b1.astype(jnp.float32).reshape(1, hidden)
    w2t = w2.astype(jnp.float32).T                                # (hidden, out_dim)
    b2_2 = b2.astype(jnp.float32).reshape(1, out_dim)

    KCL = Lh * K * C
    LH = Lh * H

    # N is tiny: a single grid step is optimal. If N grows, tile the batch with
    # a grid axis marked "parallel" (uses both v7x TensorCores + pipelining).
    return pl.pallas_call(
        _cnn_regression_kernel,
        out_shape=jax.ShapeDtypeStruct((N, out_dim), jnp.float32),
        grid=(1,),
        in_specs=[
            pl.BlockSpec((2, N, KCL), lambda i: (0, 0, 0)),
            pl.BlockSpec((KCL, LH), lambda i: (0, 0)),
            pl.BlockSpec((1, LH), lambda i: (0, 0)),
            pl.BlockSpec((LH, hidden), lambda i: (0, 0)),
            pl.BlockSpec((1, hidden), lambda i: (0, 0)),
            pl.BlockSpec((hidden, out_dim), lambda i: (0, 0)),
            pl.BlockSpec((1, out_dim), lambda i: (0, 0)),
        ],
        out_specs=pl.BlockSpec((N, out_dim), lambda i: (0, 0)),
        compiler_params=pltpu.CompilerParams(
            dimension_semantics=("arbitrary",)),
    )(xw, wc_bd, bc_t, w1f, b1_2, w2t, b2_2)


def reference_forward(x, params):
    """Pure-JAX reference matching the PyTorch module (eval mode)."""
    wc, bc, w1, b1, w2, b2 = params
    pad = wc.shape[2] // 2
    conv = jax.lax.conv_general_dilated(
        x, wc, window_strides=(1,), padding=[(pad, pad)],
        dimension_numbers=("NCH", "OIH", "NCH")) + bc[None, :, None]
    h = jnp.maximum(conv, 0.0)
    N, H, Lc = h.shape
    Lh = Lc // 2
    pooled = jnp.max(h[:, :, :Lh * 2].reshape(N, H, Lh, 2), axis=-1)
    flat = pooled.reshape(N, -1)
    z = jnp.maximum(flat @ w1.T + b1, 0.0)
    return z @ w2.T + b2


def init_params(key, input_dim, output_dim, kernel_size, hidden_dim):
    k = jax.random.split(key, 6)
    fc1_in = hidden_dim * (input_dim // 2)
    wc = jax.random.normal(k[0], (hidden_dim, input_dim, kernel_size), jnp.float32) * 0.1
    bc = jax.random.normal(k[1], (hidden_dim,), jnp.float32) * 0.1
    w1 = jax.random.normal(k[2], (hidden_dim, fc1_in), jnp.float32) * 0.05
    b1 = jax.random.normal(k[3], (hidden_dim,), jnp.float32) * 0.1
    w2 = jax.random.normal(k[4], (output_dim, hidden_dim), jnp.float32) * 0.1
    b2 = jax.random.normal(k[5], (output_dim,), jnp.float32) * 0.1
    return wc, bc, w1, b1, w2, b2


if __name__ == "__main__":
    # Module hyperparameters (forward implies input length == input_dim).
    batch, input_dim, hidden_dim, kernel_size, output_dim = 2, 16, 32, 3, 4

    key = jax.random.PRNGKey(0)
    kx, kp = jax.random.split(key)
    x = jax.random.normal(kx, (batch, input_dim, input_dim), jnp.float32)  # NCL
    params = init_params(kp, input_dim, output_dim, kernel_size, hidden_dim)

    out = cnn_regression_forward(x, params)
    out = jax.block_until_ready(out)

    ref = jax.block_until_ready(reference_forward(x, params))
    assert out.shape == (batch, output_dim)
    assert jnp.allclose(out, ref, atol=1e-4, rtol=1e-4), (out, ref)

    print("KERNEL_OK")
</pallas_src>

<mosaic_0001>
module attributes {stable_mosaic.version = 11 : i64} {
  func.func @_cnn_regression_kernel(%arg0: i32, %arg1: memref<2x2x384xf32, #tpu.memory_space<vmem>>, %arg2: memref<384x256xf32, #tpu.memory_space<vmem>>, %arg3: memref<1x256xf32, #tpu.memory_space<vmem>>, %arg4: memref<256x32xf32, #tpu.memory_space<vmem>>, %arg5: memref<1x32xf32, #tpu.memory_space<vmem>>, %arg6: memref<32x4xf32, #tpu.memory_space<vmem>>, %arg7: memref<1x4xf32, #tpu.memory_space<vmem>>, %arg8: memref<2x4xf32, #tpu.memory_space<vmem>>) attributes {dimension_semantics = [#tpu.dimension_semantics<arbitrary>], iteration_bounds = array<i64: 1>, scalar_prefetch = 0 : i64, scratch_operands = 0 : i64, tpu.core_type = #tpu.core_type<tc>, window_params = [{pipeline_mode = #tpu.pipeline_mode<synchronous>, transform_indices = @transform_0, window_bounds = array<i64: 2, 2, 384>}, {pipeline_mode = #tpu.pipeline_mode<synchronous>, transform_indices = @transform_1, window_bounds = array<i64: 384, 256>}, {pipeline_mode = #tpu.pipeline_mode<synchronous>, transform_indices = @transform_2, window_bounds = array<i64: 1, 256>}, {pipeline_mode = #tpu.pipeline_mode<synchronous>, transform_indices = @transform_3, window_bounds = array<i64: 256, 32>}, {pipeline_mode = #tpu.pipeline_mode<synchronous>, transform_indices = @transform_4, window_bounds = array<i64: 1, 32>}, {pipeline_mode = #tpu.pipeline_mode<synchronous>, transform_indices = @transform_5, window_bounds = array<i64: 32, 4>}, {pipeline_mode = #tpu.pipeline_mode<synchronous>, transform_indices = @transform_6, window_bounds = array<i64: 1, 4>}, {pipeline_mode = #tpu.pipeline_mode<synchronous>, transform_indices = @transform_7, window_bounds = array<i64: 2, 4>}]} {
    %c0 = arith.constant 0 : index
    %c0_0 = arith.constant 0 : index
    %0 = vector.load %arg2[%c0, %c0_0] : memref<384x256xf32, #tpu.memory_space<vmem>>, vector<384x256xf32>
    %c0_1 = arith.constant 0 : index
    %c0_2 = arith.constant 0 : index
    %1 = vector.load %arg3[%c0_1, %c0_2] : memref<1x256xf32, #tpu.memory_space<vmem>>, vector<1x256xf32>
    %c0_3 = arith.constant 0 : index
    %c0_4 = arith.constant 0 : index
    %c0_5 = arith.constant 0 : index
    %2 = vector.load %arg1[%c0_3, %c0_4, %c0_5] : memref<2x2x384xf32, #tpu.memory_space<vmem>>, vector<1x2x384xf32>
    %3 = vector.shape_cast %2 : vector<1x2x384xf32> to vector<2x384xf32>
    %cst = arith.constant dense<0.000000e+00> : vector<2x256xf32>
    %4 = tpu.matmul %3, %0, %cst {dimension_numbers = #tpu.dot_dimension_numbers<[1], [0], [0], [1], [0, 0, 1, 1], [], []>} : vector<2x384xf32>, vector<384x256xf32>, vector<2x256xf32> -> vector<2x256xf32>
    %5 = vector.broadcast %1 : vector<1x256xf32> to vector<2x256xf32>
    %6 = arith.addf %4, %5 : vector<2x256xf32>
    %cst_6 = arith.constant 0.000000e+00 : f32
    %7 = vector.broadcast %cst_6 : f32 to vector<2x256xf32>
    %8 = arith.maximumf %6, %7 : vector<2x256xf32>
    %c1 = arith.constant 1 : index
    %c0_7 = arith.constant 0 : index
    %c0_8 = arith.constant 0 : index
    %9 = vector.load %arg1[%c1, %c0_7, %c0_8] : memref<2x2x384xf32, #tpu.memory_space<vmem>>, vector<1x2x384xf32>
    %10 = vector.shape_cast %9 : vector<1x2x384xf32> to vector<2x384xf32>
    %cst_9 = arith.constant dense<0.000000e+00> : vector<2x256xf32>
    %11 = tpu.matmul %10, %0, %cst_9 {dimension_numbers = #tpu.dot_dimension_numbers<[1], [0], [0], [1], [0, 0, 1, 1], [], []>} : vector<2x384xf32>, vector<384x256xf32>, vector<2x256xf32> -> vector<2x256xf32>
    %12 = vector.broadcast %1 : vector<1x256xf32> to vector<2x256xf32>
    %13 = arith.addf %11, %12 : vector<2x256xf32>
    %cst_10 = arith.constant 0.000000e+00 : f32
    %14 = vector.broadcast %cst_10 : f32 to vector<2x256xf32>
    %15 = arith.maximumf %13, %14 : vector<2x256xf32>
    %16 = arith.maximumf %8, %15 : vector<2x256xf32>
    %c0_11 = arith.constant 0 : index
    %c0_12 = arith.constant 0 : index
    %17 = vector.load %arg4[%c0_11, %c0_12] : memref<256x32xf32, #tpu.memory_space<vmem>>, vector<256x32xf32>
    %cst_13 = arith.constant dense<0.000000e+00> : vector<2x32xf32>
    %18 = tpu.matmul %16, %17, %cst_13 {dimension_numbers = #tpu.dot_dimension_numbers<[1], [0], [0], [1], [0, 0, 1, 1], [], []>} : vector<2x256xf32>, vector<256x32xf32>, vector<2x32xf32> -> vector<2x32xf32>
    %c0_14 = arith.constant 0 : index
    %c0_15 = arith.constant 0 : index
    %19 = vector.load %arg5[%c0_14, %c0_15] : memref<1x32xf32, #tpu.memory_space<vmem>>, vector<1x32xf32>
    %20 = vector.broadcast %19 : vector<1x32xf32> to vector<2x32xf32>
    %21 = arith.addf %18, %20 : vector<2x32xf32>
    %cst_16 = arith.constant 0.000000e+00 : f32
    %22 = vector.broadcast %cst_16 : f32 to vector<2x32xf32>
    %23 = arith.maximumf %21, %22 : vector<2x32xf32>
    %c0_17 = arith.constant 0 : index
    %c0_18 = arith.constant 0 : index
    %24 = vector.load %arg6[%c0_17, %c0_18] : memref<32x4xf32, #tpu.memory_space<vmem>>, vector<32x4xf32>
    %cst_19 = arith.constant dense<0.000000e+00> : vector<2x4xf32>
    %25 = tpu.matmul %23, %24, %cst_19 {dimension_numbers = #tpu.dot_dimension_numbers<[1], [0], [0], [1], [0, 0, 1, 1], [], []>} : vector<2x32xf32>, vector<32x4xf32>, vector<2x4xf32> -> vector<2x4xf32>
    %c0_20 = arith.constant 0 : index
    %c0_21 = arith.constant 0 : index
    %26 = vector.load %arg7[%c0_20, %c0_21] : memref<1x4xf32, #tpu.memory_space<vmem>>, vector<1x4xf32>
    %27 = vector.broadcast %26 : vector<1x4xf32> to vector<2x4xf32>
    %28 = arith.addf %25, %27 : vector<2x4xf32>
    %c0_22 = arith.constant 0 : index
    %c0_23 = arith.constant 0 : index
    %29 = vector.load %arg8[%c0_22, %c0_23] : memref<2x4xf32, #tpu.memory_space<vmem>>, vector<2x4xf32>
    tpu.vector_store %arg8[%c0_22, %c0_23], %28 {strides = array<i32>} : memref<2x4xf32, #tpu.memory_space<vmem>>, vector<2x4xf32>,
    return
  }
  func.func @transform_0(%arg0: i32) -> (i32, i32, i32) {
    %c0_i32 = arith.constant 0 : i32
    %c0_i32_0 = arith.constant 0 : i32
    %c0_i32_1 = arith.constant 0 : i32
    %c0_i32_2 = arith.constant 0 : i32
    return %c0_i32, %c0_i32_0, %c0_i32_1 : i32, i32, i32
  }
  func.func @transform_1(%arg0: i32) -> (i32, i32) {
    %c0_i32 = arith.constant 0 : i32
    %c0_i32_0 = arith.constant 0 : i32
    %c0_i32_1 = arith.constant 0 : i32
    return %c0_i32, %c0_i32_0 : i32, i32
  }
  func.func @transform_2(%arg0: i32) -> (i32, i32) {
    %c0_i32 = arith.constant 0 : i32
    %c0_i32_0 = arith.constant 0 : i32
    %c0_i32_1 = arith.constant 0 : i32
    return %c0_i32, %c0_i32_0 : i32, i32
  }
  func.func @transform_3(%arg0: i32) -> (i32, i32) {
    %c0_i32 = arith.constant 0 : i32
    %c0_i32_0 = arith.constant 0 : i32
    %c0_i32_1 = arith.constant 0 : i32
    return %c0_i32, %c0_i32_0 : i32, i32
  }
  func.func @transform_4(%arg0: i32) -> (i32, i32) {
    %c0_i32 = arith.constant 0 : i32
    %c0_i32_0 = arith.constant 0 : i32
    %c0_i32_1 = arith.constant 0 : i32
    return %c0_i32, %c0_i32_0 : i32, i32
  }
  func.func @transform_5(%arg0: i32) -> (i32, i32) {
    %c0_i32 = arith.constant 0 : i32
    %c0_i32_0 = arith.constant 0 : i32
    %c0_i32_1 = arith.constant 0 : i32
    return %c0_i32, %c0_i32_0 : i32, i32
  }
  func.func @transform_6(%arg0: i32) -> (i32, i32) {
    %c0_i32 = arith.constant 0 : i32
    %c0_i32_0 = arith.constant 0 : i32
    %c0_i32_1 = arith.constant 0 : i32
    return %c0_i32, %c0_i32_0 : i32, i32
  }
  func.func @transform_7(%arg0: i32) -> (i32, i32) {
    %c0_i32 = arith.constant 0 : i32
    %c0_i32_0 = arith.constant 0 : i32
    %c0_i32_1 = arith.constant 0 : i32
    return %c0_i32, %c0_i32_0 : i32, i32
  }
}

</mosaic_0001>

<llo_original>
// kernel: tpu_custom_call.1
$region0: #{tpu_custom_call.1}
  #allocation0 [shape = 'u32[]', space=smem, size = 0x4, offset = 0x4, fixed_abs, tag = 'smem constant byte address 0x4 - core index']
  #allocation1 [shape = 'u32[144,128]{1,0:T(1,128)}', space=vmem, size = 0x12000, scoped, tag = 'internal scratch']
  %s0 = inlined_call_operand.vmem [shape: f32[2,2,384], index: 0, kind: input, shape index: {}]
  %s1 = inlined_call_operand.hbm [shape: f32[384,256], index: 1, kind: input, shape index: {}]
  %s2 = inlined_call_operand.vmem [shape: f32[1,256], index: 2, kind: input, shape index: {}]
  %s3 = inlined_call_operand.vmem [shape: f32[256,32], index: 3, kind: input, shape index: {}]
  %s4 = inlined_call_operand.vmem [shape: f32[1,32], index: 4, kind: input, shape index: {}]
  %s5 = inlined_call_operand.vmem [shape: f32[32,4], index: 5, kind: input, shape index: {}]
  %s6 = inlined_call_operand.vmem [shape: f32[1,4], index: 6, kind: input, shape index: {}]
  %s7 = inlined_call_operand.hbm [shape: f32[2,4], index: 7, kind: output, shape index: {}]
  %s8 = sld [smem:[#allocation0]]
  $region42: #{tpu_custom_call.1} parent=0
    _
  %s10 = ssub.s32 1, %s8
  %s11 = scalar_select 0, %s10, %s8
  $region1: #{tpu_custom_call.1} parent=0
    #allocation2 [shape = 'u8[393216]{0}', space=vmem, size = 0x60000, scoped, tag = 'input window, operand 1, single buffered']
    #allocation3 [shape = 's32[1]{0}', space=sflag, size = 0x4, scoped, tag = 'scoped memory for tpu_custom_call.1']
    #allocation4 [shape = 's32[1]{0}', space=sflag, size = 0x4, scoped, tag = 'scoped memory for tpu_custom_call.1']
    #allocation5 [shape = 'u8[1024]{0}', space=vmem, size = 0x400, scoped, tag = 'output window, operand 0, single buffered']
    %12 = vsyncpa [#allocation3], 0
    %13 = vsyncpa [#allocation4], 0
    // Predicated region
    $region2: #{tpu_custom_call.1} parent=1 // pred_check
      _
    $region3: #{tpu_custom_call.1} parent=1 // pred_check_branch
      %15 = sbr.rel (0) target = $region5
    $region4: #{tpu_custom_call.1} parent=1 // pred_region
      _
    $region5: #{tpu_custom_call.1} parent=1 // pred_fallthru
      _
    // Predicated region
    $region6: #{tpu_custom_call.1} parent=1 // pred_check
      _
    $region7: #{tpu_custom_call.1} parent=1 // pred_check_branch
      %17 = sbr.rel (0) target = $region9
    $region8: #{tpu_custom_call.1} parent=1 // pred_region
      %s19 = ssub.s32 12288, 12288
      %20 = vsyncadd [#allocation3], %s19
      %s21 = sshll.u32 [#allocation2], 4
      %s22 = int_to_ptr.vmem [resolvable:$true] %s21
      %27 = dma.hbm_to_vmem [thread:$0]  %s1, 12288, %s22, [#allocation3], 256, 256, 16
    $region9: #{tpu_custom_call.1} parent=1 // pred_fallthru
      _
    // Predicated region
    $region10: #{tpu_custom_call.1} parent=1 // pred_check
      _
    $region11: #{tpu_custom_call.1} parent=1 // pred_check_branch
      %29 = sbr.rel (0) target = $region13
    $region12: #{tpu_custom_call.1} parent=1 // pred_region
      _
    $region13: #{tpu_custom_call.1} parent=1 // pred_fallthru
      _
    // Predicated region
    $region14: #{tpu_custom_call.1} parent=1 // pred_check
      _
    $region15: #{tpu_custom_call.1} parent=1 // pred_check_branch
      %31 = sbr.rel (0) target = $region17
    $region16: #{tpu_custom_call.1} parent=1 // pred_region
      _
    $region17: #{tpu_custom_call.1} parent=1 // pred_fallthru
      _
    // Predicated region
    $region18: #{tpu_custom_call.1} parent=1 // pred_check
      _
    $region19: #{tpu_custom_call.1} parent=1 // pred_check_branch
      %33 = sbr.rel (0) target = $region21
    $region20: #{tpu_custom_call.1} parent=1 // pred_region
      _
    $region21: #{tpu_custom_call.1} parent=1 // pred_fallthru
      _
    // Predicated region
    $region22: #{tpu_custom_call.1} parent=1 // pred_check
      _
    $region23: #{tpu_custom_call.1} parent=1 // pred_check_branch
      %35 = sbr.rel (0) target = $region25
    $region24: #{tpu_custom_call.1} parent=1 // pred_region
      _
    $region25: #{tpu_custom_call.1} parent=1 // pred_fallthru
      _
    // Predicated region
    $region26: #{tpu_custom_call.1} parent=1 // pred_check
      _
    $region27: #{tpu_custom_call.1} parent=1 // pred_check_branch
      %37 = sbr.rel (0) target = $region29
    $region28: #{tpu_custom_call.1} parent=1 // pred_region
      _
    $region29: #{tpu_custom_call.1} parent=1 // pred_fallthru
      _
    // Predicated region
    $region30: #{tpu_custom_call.1} parent=1 // pred_check
      _
    $region31: #{tpu_custom_call.1} parent=1 // pred_check_branch
      %39 = sbr.rel (0) target = $region33
    $region32: #{tpu_custom_call.1} parent=1 // pred_region
      %40 = dma.done [#allocation3], 12288
    $region33: #{tpu_custom_call.1} parent=1 // pred_fallthru
      _
    %v41 = vld [vmem:[#allocation2] sm:$0xff]
    %v42 = vld [vmem:[#allocation2 + $0x8] sm:$0xff]
    %v43 = vld [vmem:[#allocation2 + $0x10] sm:$0xff]
    %v44 = vld [vmem:[#allocation2 + $0x18] sm:$0xff]
    %v45 = vld [vmem:[#allocation2 + $0x20] sm:$0xff]
    %v46 = vld [vmem:[#allocation2 + $0x28] sm:$0xff]
    %v47 = vld [vmem:[#allocation2 + $0x30] sm:$0xff]
    %v48 = vld [vmem:[#allocation2 + $0x38] sm:$0xff]
    %v49 = vld [vmem:[#allocation2 + $0x40] sm:$0xff]
    %v50 = vld [vmem:[#allocation2 + $0x48] sm:$0xff]
    %v51 = vld [vmem:[#allocation2 + $0x50] sm:$0xff]
    %v52 = vld [vmem:[#allocation2 + $0x58] sm:$0xff]
    %v53 = vld [vmem:[#allocation2 + $0x60] sm:$0xff]
    %v54 = vld [vmem:[#allocation2 + $0x68] sm:$0xff]
    %v55 = vld [vmem:[#allocation2 + $0x70] sm:$0xff]
    %v56 = vld [vmem:[#allocation2 + $0x78] sm:$0xff]
    %v57 = vld [vmem:[#allocation2 + $0x80] sm:$0xff]
    %v58 = vld [vmem:[#allocation2 + $0x88] sm:$0xff]
    %v59 = vld [vmem:[#allocation2 + $0x90] sm:$0xff]
    %v60 = vld [vmem:[#allocation2 + $0x98] sm:$0xff]
    %v61 = vld [vmem:[#allocation2 + $0xa0] sm:$0xff]
    %v62 = vld [vmem:[#allocation2 + $0xa8] sm:$0xff]
    %v63 = vld [vmem:[#allocation2 + $0xb0] sm:$0xff]
    %v64 = vld [vmem:[#allocation2 + $0xb8] sm:$0xff]
    %v65 = vld [vmem:[#allocation2 + $0xc0] sm:$0xff]
    %v66 = vld [vmem:[#allocation2 + $0xc8] sm:$0xff]
    %v67 = vld [vmem:[#allocation2 + $0xd0] sm:$0xff]
    %v68 = vld [vmem:[#allocation2 + $0xd8] sm:$0xff]
    %v69 = vld [vmem:[#allocation2 + $0xe0] sm:$0xff]
    %v70 = vld [vmem:[#allocation2 + $0xe8] sm:$0xff]
    %v71 = vld [vmem:[#allocation2 + $0xf0] sm:$0xff]
    %v72 = vld [vmem:[#allocation2 + $0xf8] sm:$0xff]
    %v73 = vld [vmem:[#allocation2 + $0x100] sm:$0xff]
    %v74 = vld [vmem:[#allocation2 + $0x108] sm:$0xff]
    %v75 = vld [vmem:[#allocation2 + $0x110] sm:$0xff]
    %v76 = vld [vmem:[#allocation2 + $0x118] sm:$0xff]
    %v77 = vld [vmem:[#allocation2 + $0x120] sm:$0xff]
    %v78 = vld [vmem:[#allocation2 + $0x128] sm:$0xff]
    %v79 = vld [vmem:[#allocation2 + $0x130] sm:$0xff]
    %v80 = vld [vmem:[#allocation2 + $0x138] sm:$0xff]
    %v81 = vld [vmem:[#allocation2 + $0x140] sm:$0xff]
    %v82 = vld [vmem:[#allocation2 + $0x148] sm:$0xff]
    %v83 = vld [vmem:[#allocation2 + $0x150] sm:$0xff]
    %v84 = vld [vmem:[#allocation2 + $0x158] sm:$0xff]
    %v85 = vld [vmem:[#allocation2 + $0x160] sm:$0xff]
    %v86 = vld [vmem:[#allocation2 + $0x168] sm:$0xff]
    %v87 = vld [vmem:[#allocation2 + $0x170] sm:$0xff]
    %v88 = vld [vmem:[#allocation2 + $0x178] sm:$0xff]
    %v89 = vld [vmem:[#allocation2 + $0x180] sm:$0xff]
    %v90 = vld [vmem:[#allocation2 + $0x188] sm:$0xff]
    %v91 = vld [vmem:[#allocation2 + $0x190] sm:$0xff]
    %v92 = vld [vmem:[#allocation2 + $0x198] sm:$0xff]
    %v93 = vld [vmem:[#allocation2 + $0x1a0] sm:$0xff]
    %v94 = vld [vmem:[#allocation2 + $0x1a8] sm:$0xff]
    %v95 = vld [vmem:[#allocation2 + $0x1b0] sm:$0xff]
    %v96 = vld [vmem:[#allocation2 + $0x1b8] sm:$0xff]
    %v97 = vld [vmem:[#allocation2 + $0x1c0] sm:$0xff]
    %v98 = vld [vmem:[#allocation2 + $0x1c8] sm:$0xff]
    %v99 = vld [vmem:[#allocation2 + $0x1d0] sm:$0xff]
    %v100 = vld [vmem:[#allocation2 + $0x1d8] sm:$0xff]
    %v101 = vld [vmem:[#allocation2 + $0x1e0] sm:$0xff]
    %v102 = vld [vmem:[#allocation2 + $0x1e8] sm:$0xff]
    %v103 = vld [vmem:[#allocation2 + $0x1f0] sm:$0xff]
    %v104 = vld [vmem:[#allocation2 + $0x1f8] sm:$0xff]
    %v105 = vld [vmem:[#allocation2 + $0x200] sm:$0xff]
    %v106 = vld [vmem:[#allocation2 + $0x208] sm:$0xff]
    %v107 = vld [vmem:[#allocation2 + $0x210] sm:$0xff]
    %v108 = vld [vmem:[#allocation2 + $0x218] sm:$0xff]
    %v109 = vld [vmem:[#allocation2 + $0x220] sm:$0xff]
    %v110 = vld [vmem:[#allocation2 + $0x228] sm:$0xff]
    %v111 = vld [vmem:[#allocation2 + $0x230] sm:$0xff]
    %v112 = vld [vmem:[#allocation2 + $0x238] sm:$0xff]
    %v113 = vld [vmem:[#allocation2 + $0x240] sm:$0xff]
    %v114 = vld [vmem:[#allocation2 + $0x248] sm:$0xff]
    %v115 = vld [vmem:[#allocation2 + $0x250] sm:$0xff]
    %v116 = vld [vmem:[#allocation2 + $0x258] sm:$0xff]
    %v117 = vld [vmem:[#allocation2 + $0x260] sm:$0xff]
    %v118 = vld [vmem:[#allocation2 + $0x268] sm:$0xff]
    %v119 = vld [vmem:[#allocation2 + $0x270] sm:$0xff]
    %v120 = vld [vmem:[#allocation2 + $0x278] sm:$0xff]
    %v121 = vld [vmem:[#allocation2 + $0x280] sm:$0xff]
    %v122 = vld [vmem:[#allocation2 + $0x288] sm:$0xff]
    %v123 = vld [vmem:[#allocation2 + $0x290] sm:$0xff]
    %v124 = vld [vmem:[#allocation2 + $0x298] sm:$0xff]
    %v125 = vld [vmem:[#allocation2 + $0x2a0] sm:$0xff]
    %v126 = vld [vmem:[#allocation2 + $0x2a8] sm:$0xff]
    %v127 = vld [vmem:[#allocation2 + $0x2b0] sm:$0xff]
    %v128 = vld [vmem:[#allocation2 + $0x2b8] sm:$0xff]
    %v129 = vld [vmem:[#allocation2 + $0x2c0] sm:$0xff]
    %v130 = vld [vmem:[#allocation2 + $0x2c8] sm:$0xff]
    %v131 = vld [vmem:[#allocation2 + $0x2d0] sm:$0xff]
    %v132 = vld [vmem:[#allocation2 + $0x2d8] sm:$0xff]
    %v133 = vld [vmem:[#allocation2 + $0x2e0] sm:$0xff]
    %v134 = vld [vmem:[#allocation2 + $0x2e8] sm:$0xff]
    %v135 = vld [vmem:[#allocation2 + $0x2f0] sm:$0xff]
    %v136 = vld [vmem:[#allocation2 + $0x2f8] sm:$0xff]
    %v137 = vld [vmem:[%s2] sm:$0x3]
    %v138 = vld [vmem:[%s0] sm:$0x3f]
    %v140 = vlaneseq
    %v141 = vshrl.u32 %v140, 7
    %v142 = vsub.s32 0, %v141
    %v143 = vrot.slane %v137, %v142
    %v144 = vlaneseq
    %v145 = vshrl.u32 %v144, 7
    %v146 = vsub.s32 1, %v145
    %v147 = vrot.slane %v137, %v146
    %v151 = vcombine.high %v138, %v138
    %v153 = vunpack.c.l.s4 1983009808
    %v154 = vunpack.c.0.s8 %v153
    %v155 = vlaneseq
    %v156 = vshrl.u32 %v155, 7
    %v157 = vsub.s32 %v154, %v156
    %v158 = vrot.slane %v138, %v157
    %v160 = vunpack.c.l.s4 1983009808
    %v161 = vunpack.c.0.s8 %v160
    %v162 = vlaneseq
    %v163 = vshrl.u32 %v162, 7
    %v164 = vsub.s32 %v161, %v163
    %v165 = vrot.slane %v151, %v164
    %v166 = vcombine.high %v158, %v158
    %170 = vmatprep.subr.mxu0 %v72
    %171 = vmatpush1.msra.mxu0 %v71
    %172 = vmatprep.subr.mxu0 %v70
    %173 = vmatpush1.msra.mxu0 %v69
    %174 = vmatprep.subr.mxu0 %v68
    %175 = vmatpush1.msra.mxu0 %v67
    %176 = vmatprep.subr.mxu0 %v66
    %177 = vmatpush1.msra.mxu0 %v65
    %178 = vmatprep.subr.mxu0 %v64
    %179 = vmatpush1.msra.mxu0 %v63
    %180 = vmatprep.subr.mxu0 %v62
    %181 = vmatpush1.msra.mxu0 %v61
    %182 = vmatprep.subr.mxu0 %v60
    %183 = vmatpush1.msra.mxu0 %v59
    %184 = vmatprep.subr.mxu0 %v58
    %185 = vmatpush1.msra.mxu0 %v57
    %186 = vmatprep.subr.mxu0 %v56
    %187 = vmatpush1.msra.mxu0 %v55
    %188 = vmatprep.subr.mxu0 %v54
    %189 = vmatpush1.msra.mxu0 %v53
    %190 = vmatprep.subr.mxu0 %v52
    %191 = vmatpush1.msra.mxu0 %v51
    %192 = vmatprep.subr.mxu0 %v50
    %193 = vmatpush1.msra.mxu0 %v49
    %194 = vmatprep.subr.mxu0 %v48
    %195 = vmatpush1.msra.mxu0 %v47
    %196 = vmatprep.subr.mxu0 %v46
    %197 = vmatpush1.msra.mxu0 %v45
    %198 = vmatprep.subr.mxu0 %v44
    %199 = vmatpush1.msra.mxu0 %v43
    %200 = vmatprep.subr.mxu0 %v42
    %201 = vmatpush1.msra.mxu0 %v41
    %202 = vmatprep.subr.mxu0 %v104
    %203 = vmatpush2.msra.mxu0 %v103
    %204 = vmatprep.subr.mxu0 %v102
    %205 = vmatpush2.msra.mxu0 %v101
    %206 = vmatprep.subr.mxu0 %v100
    %207 = vmatpush2.msra.mxu0 %v99
    %208 = vmatprep.subr.mxu0 %v98
    %209 = vmatpush2.msra.mxu0 %v97
    %210 = vmatprep.subr.mxu0 %v96
    %211 = vmatpush2.msra.mxu0 %v95
    %212 = vmatprep.subr.mxu0 %v94
    %213 = vmatpush2.msra.mxu0 %v93
    %214 = vmatprep.subr.mxu0 %v92
    %215 = vmatpush2.msra.mxu0 %v91
    %216 = vmatprep.subr.mxu0 %v90
    %217 = vmatpush2.msra.mxu0 %v89
    %218 = vmatprep.subr.mxu0 %v88
    %219 = vmatpush2.msra.mxu0 %v87
    %220 = vmatprep.subr.mxu0 %v86
    %221 = vmatpush2.msra.mxu0 %v85
    %222 = vmatprep.subr.mxu0 %v84
    %223 = vmatpush2.msra.mxu0 %v83
    %224 = vmatprep.subr.mxu0 %v82
    %225 = vmatpush2.msra.mxu0 %v81
    %226 = vmatprep.subr.mxu0 %v80
    %227 = vmatpush2.msra.mxu0 %v79
    %228 = vmatprep.subr.mxu0 %v78
    %229 = vmatpush2.msra.mxu0 %v77
    %230 = vmatprep.subr.mxu0 %v76
    %231 = vmatpush2.msra.mxu0 %v75
    %232 = vmatprep.subr.mxu0 %v74
    %233 = vmatpush2.msra.mxu0 %v73
    %234 = vmatprep.mubr.f32.mxu0 %v166
    %235 = vmatmul.mubr.f32.gmra.mxu0 %v158
    %v236 = vpop.f32.mrf.mxu0
    %v237 = vadd.f32 %v143, %v236
    %v238 = vpop.f32.mrf.mxu0
    %v239 = vadd.f32 %v147, %v238
    %240 = vdwg.mxu0
    %241 = vmatprep.subr.mxu0 %v136
    %242 = vmatpush1.msra.mxu0 %v135
    %243 = vmatprep.subr.mxu0 %v134
    %244 = vmatpush1.msra.mxu0 %v133
    %245 = vmatprep.subr.mxu0 %v132
    %246 = vmatpush1.msra.mxu0 %v131
    %247 = vmatprep.subr.mxu0 %v130
    %248 = vmatpush1.msra.mxu0 %v129
    %249 = vmatprep.subr.mxu0 %v128
    %250 = vmatpush1.msra.mxu0 %v127
    %251 = vmatprep.subr.mxu0 %v126
    %252 = vmatpush1.msra.mxu0 %v125
    %253 = vmatprep.subr.mxu0 %v124
    %254 = vmatpush1.msra.mxu0 %v123
    %255 = vmatprep.subr.mxu0 %v122
    %256 = vmatpush1.msra.mxu0 %v121
    %257 = vmatprep.subr.mxu0 %v120
    %258 = vmatpush1.msra.mxu0 %v119
    %259 = vmatprep.subr.mxu0 %v118
    %260 = vmatpush1.msra.mxu0 %v117
    %261 = vmatprep.subr.mxu0 %v116
    %262 = vmatpush1.msra.mxu0 %v115
    %263 = vmatprep.subr.mxu0 %v114
    %264 = vmatpush1.msra.mxu0 %v113
    %265 = vmatprep.subr.mxu0 %v112
    %266 = vmatpush1.msra.mxu0 %v111
    %267 = vmatprep.subr.mxu0 %v110
    %268 = vmatpush1.msra.mxu0 %v109
    %269 = vmatprep.subr.mxu0 %v108
    %270 = vmatpush1.msra.mxu0 %v107
    %271 = vmatprep.subr.mxu0 %v106
    %272 = vmatpush1.msra.mxu0 %v105
    %273 = vmatprep.subr.mxu0 0.0
    %274 = vmatpush2.msra.mxu0 0.0
    %275 = vmatprep.subr.mxu0 0.0
    %276 = vmatpush2.msra.mxu0 0.0
    %277 = vmatprep.subr.mxu0 0.0
    %278 = vmatpush2.msra.mxu0 0.0
    %279 = vmatprep.subr.mxu0 0.0
    %280 = vmatpush2.msra.mxu0 0.0
    %281 = vmatprep.subr.mxu0 0.0
    %282 = vmatpush2.msra.mxu0 0.0
    %283 = vmatprep.subr.mxu0 0.0
    %284 = vmatpush2.msra.mxu0 0.0
    %285 = vmatprep.subr.mxu0 0.0
    %286 = vmatpush2.msra.mxu0 0.0
    %287 = vmatprep.subr.mxu0 0.0
    %288 = vmatpush2.msra.mxu0 0.0
    %289 = vmatprep.subr.mxu0 0.0
    %290 = vmatpush2.msra.mxu0 0.0
    %291 = vmatprep.subr.mxu0 0.0
    %292 = vmatpush2.msra.mxu0 0.0
    %293 = vmatprep.subr.mxu0 0.0
    %294 = vmatpush2.msra.mxu0 0.0
    %295 = vmatprep.subr.mxu0 0.0
    %296 = vmatpush2.msra.mxu0 0.0
    %297 = vmatprep.subr.mxu0 0.0
    %298 = vmatpush2.msra.mxu0 0.0
    %299 = vmatprep.subr.mxu0 0.0
    %300 = vmatpush2.msra.mxu0 0.0
    %301 = vmatprep.subr.mxu0 0.0
    %302 = vmatpush2.msra.mxu0 0.0
    %303 = vmatprep.subr.mxu0 0.0
    %304 = vmatpush2.msra.mxu0 0.0
    %305 = vmatprep.mubr.f32.mxu0 0.0
    %306 = vmatmul.mubr.f32.gmra.mxu0 %v165
    %v307 = vpop.f32.mrf.mxu0
    %v308 = vadd.f32 %v237, %v307
    %v309 = vpop.f32.mrf.mxu0
    %v310 = vadd.f32 %v239, %v309
    %311 = vdwg.mxu0
    %v312 = vmax.f32 %v308, 0.0
    %v313 = vmax.f32 %v310, 0.0
    %s314 = scalar_lea.vmem %s0, 6
    %v315 = vld [vmem:[%s314] sm:$0x3f]
    %v317 = vcombine.high %v315, %v315
    %v319 = vunpack.c.l.s4 1983009808
    %v320 = vunpack.c.0.s8 %v319
    %v321 = vlaneseq
    %v322 = vshrl.u32 %v321, 7
    %v323 = vsub.s32 %v320, %v322
    %v324 = vrot.slane %v315, %v323
    %v326 = vunpack.c.l.s4 1983009808
    %v327 = vunpack.c.0.s8 %v326
    %v328 = vlaneseq
    %v329 = vshrl.u32 %v328, 7
    %v330 = vsub.s32 %v327, %v329
    %v331 = vrot.slane %v317, %v330
    %v332 = vcombine.high %v324, %v324
    %336 = vmatprep.subr.mxu0 %v72
    %337 = vmatpush1.msra.mxu0 %v71
    %338 = vmatprep.subr.mxu0 %v70
    %339 = vmatpush1.msra.mxu0 %v69
    %340 = vmatprep.subr.mxu0 %v68
    %341 = vmatpush1.msra.mxu0 %v67
    %342 = vmatprep.subr.mxu0 %v66
    %343 = vmatpush1.msra.mxu0 %v65
    %344 = vmatprep.subr.mxu0 %v64
    %345 = vmatpush1.msra.mxu0 %v63
    %346 = vmatprep.subr.mxu0 %v62
    %347 = vmatpush1.msra.mxu0 %v61
    %348 = vmatprep.subr.mxu0 %v60
    %349 = vmatpush1.msra.mxu0 %v59
    %350 = vmatprep.subr.mxu0 %v58
    %351 = vmatpush1.msra.mxu0 %v57
    %352 = vmatprep.subr.mxu0 %v56
    %353 = vmatpush1.msra.mxu0 %v55
    %354 = vmatprep.subr.mxu0 %v54
    %355 = vmatpush1.msra.mxu0 %v53
    %356 = vmatprep.subr.mxu0 %v52
    %357 = vmatpush1.msra.mxu0 %v51
    %358 = vmatprep.subr.mxu0 %v50
    %359 = vmatpush1.msra.mxu0 %v49
    %360 = vmatprep.subr.mxu0 %v48
    %361 = vmatpush1.msra.mxu0 %v47
    %362 = vmatprep.subr.mxu0 %v46
    %363 = vmatpush1.msra.mxu0 %v45
    %364 = vmatprep.subr.mxu0 %v44
    %365 = vmatpush1.msra.mxu0 %v43
    %366 = vmatprep.subr.mxu0 %v42
    %367 = vmatpush1.msra.mxu0 %v41
    %368 = vmatprep.subr.mxu0 %v104
    %369 = vmatpush2.msra.mxu0 %v103
    %370 = vmatprep.subr.mxu0 %v102
    %371 = vmatpush2.msra.mxu0 %v101
    %372 = vmatprep.subr.mxu0 %v100
    %373 = vmatpush2.msra.mxu0 %v99
    %374 = vmatprep.subr.mxu0 %v98
    %375 = vmatpush2.msra.mxu0 %v97
    %376 = vmatprep.subr.mxu0 %v96
    %377 = vmatpush2.msra.mxu0 %v95
    %378 = vmatprep.subr.mxu0 %v94
    %379 = vmatpush2.msra.mxu0 %v93
    %380 = vmatprep.subr.mxu0 %v92
    %381 = vmatpush2.msra.mxu0 %v91
    %382 = vmatprep.subr.mxu0 %v90
    %383 = vmatpush2.msra.mxu0 %v89
    %384 = vmatprep.subr.mxu0 %v88
    %385 = vmatpush2.msra.mxu0 %v87
    %386 = vmatprep.subr.mxu0 %v86
    %387 = vmatpush2.msra.mxu0 %v85
    %388 = vmatprep.subr.mxu0 %v84
    %389 = vmatpush2.msra.mxu0 %v83
    %390 = vmatprep.subr.mxu0 %v82
    %391 = vmatpush2.msra.mxu0 %v81
    %392 = vmatprep.subr.mxu0 %v80
    %393 = vmatpush2.msra.mxu0 %v79
    %394 = vmatprep.subr.mxu0 %v78
    %395 = vmatpush2.msra.mxu0 %v77
    %396 = vmatprep.subr.mxu0 %v76
    %397 = vmatpush2.msra.mxu0 %v75
    %398 = vmatprep.subr.mxu0 %v74
    %399 = vmatpush2.msra.mxu0 %v73
    %400 = vmatprep.mubr.f32.mxu0 %v332
    %401 = vmatmul.mubr.f32.gmra.mxu0 %v324
    %v402 = vpop.f32.mrf.mxu0
    %v403 = vadd.f32 %v143, %v402
    %v404 = vpop.f32.mrf.mxu0
    %v405 = vadd.f32 %v147, %v404
    %406 = vdwg.mxu0
    %407 = vmatprep.subr.mxu0 %v136
    %408 = vmatpush1.msra.mxu0 %v135
    %409 = vmatprep.subr.mxu0 %v134
    %410 = vmatpush1.msra.mxu0 %v133
    %411 = vmatprep.subr.mxu0 %v132
    %412 = vmatpush1.msra.mxu0 %v131
    %413 = vmatprep.subr.mxu0 %v130
    %414 = vmatpush1.msra.mxu0 %v129
    %415 = vmatprep.subr.mxu0 %v128
    %416 = vmatpush1.msra.mxu0 %v127
    %417 = vmatprep.subr.mxu0 %v126
    %418 = vmatpush1.msra.mxu0 %v125
    %419 = vmatprep.subr.mxu0 %v124
    %420 = vmatpush1.msra.mxu0 %v123
    %421 = vmatprep.subr.mxu0 %v122
    %422 = vmatpush1.msra.mxu0 %v121
    %423 = vmatprep.subr.mxu0 %v120
    %424 = vmatpush1.msra.mxu0 %v119
    %425 = vmatprep.subr.mxu0 %v118
    %426 = vmatpush1.msra.mxu0 %v117
    %427 = vmatprep.subr.mxu0 %v116
    %428 = vmatpush1.msra.mxu0 %v115
    %429 = vmatprep.subr.mxu0 %v114
    %430 = vmatpush1.msra.mxu0 %v113
    %431 = vmatprep.subr.mxu0 %v112
    %432 = vmatpush1.msra.mxu0 %v111
    %433 = vmatprep.subr.mxu0 %v110
    %434 = vmatpush1.msra.mxu0 %v109
    %435 = vmatprep.subr.mxu0 %v108
    %436 = vmatpush1.msra.mxu0 %v107
    %437 = vmatprep.subr.mxu0 %v106
    %438 = vmatpush1.msra.mxu0 %v105
    %439 = vmatprep.subr.mxu0 0.0
    %440 = vmatpush2.msra.mxu0 0.0
    %441 = vmatprep.subr.mxu0 0.0
    %442 = vmatpush2.msra.mxu0 0.0
    %443 = vmatprep.subr.mxu0 0.0
    %444 = vmatpush2.msra.mxu0 0.0
    %445 = vmatprep.subr.mxu0 0.0
    %446 = vmatpush2.msra.mxu0 0.0
    %447 = vmatprep.subr.mxu0 0.0
    %448 = vmatpush2.msra.mxu0 0.0
    %449 = vmatprep.subr.mxu0 0.0
    %450 = vmatpush2.msra.mxu0 0.0
    %451 = vmatprep.subr.mxu0 0.0
    %452 = vmatpush2.msra.mxu0 0.0
    %453 = vmatprep.subr.mxu0 0.0
    %454 = vmatpush2.msra.mxu0 0.0
    %455 = vmatprep.subr.mxu0 0.0
    %456 = vmatpush2.msra.mxu0 0.0
    %457 = vmatprep.subr.mxu0 0.0
    %458 = vmatpush2.msra.mxu0 0.0
    %459 = vmatprep.subr.mxu0 0.0
    %460 = vmatpush2.msra.mxu0 0.0
    %461 = vmatprep.subr.mxu0 0.0
    %462 = vmatpush2.msra.mxu0 0.0
    %463 = vmatprep.subr.mxu0 0.0
    %464 = vmatpush2.msra.mxu0 0.0
    %465 = vmatprep.subr.mxu0 0.0
    %466 = vmatpush2.msra.mxu0 0.0
    %467 = vmatprep.subr.mxu0 0.0
    %468 = vmatpush2.msra.mxu0 0.0
    %469 = vmatprep.subr.mxu0 0.0
    %470 = vmatpush2.msra.mxu0 0.0
    %471 = vmatprep.mubr.f32.mxu0 0.0
    %472 = vmatmul.mubr.f32.gmra.mxu0 %v331
    %v473 = vpop.f32.mrf.mxu0
    %v474 = vadd.f32 %v403, %v473
    %v475 = vpop.f32.mrf.mxu0
    %v476 = vadd.f32 %v405, %v475
    %477 = vdwg.mxu0
    %v478 = vmax.f32 %v474, 0.0
    %v479 = vmax.f32 %v476, 0.0
    %v480 = vmax.f32 %v312, %v478
    %v481 = vmax.f32 %v313, %v479
    %v482 = vld [vmem:[%s3] sm:$0xff]
    %v483 = vld [vmem:[%s3 + $0x8] sm:$0xff]
    %v484 = vld [vmem:[%s3 + $0x10] sm:$0xff]
    %v485 = vld [vmem:[%s3 + $0x18] sm:$0xff]
    %v486 = vld [vmem:[%s3 + $0x20] sm:$0xff]
    %v487 = vld [vmem:[%s3 + $0x28] sm:$0xff]
    %v488 = vld [vmem:[%s3 + $0x30] sm:$0xff]
    %v489 = vld [vmem:[%s3 + $0x38] sm:$0xff]
    %v490 = vld [vmem:[%s3 + $0x40] sm:$0xff]
    %v491 = vld [vmem:[%s3 + $0x48] sm:$0xff]
    %v492 = vld [vmem:[%s3 + $0x50] sm:$0xff]
    %v493 = vld [vmem:[%s3 + $0x58] sm:$0xff]
    %v494 = vld [vmem:[%s3 + $0x60] sm:$0xff]
    %v495 = vld [vmem:[%s3 + $0x68] sm:$0xff]
    %v496 = vld [vmem:[%s3 + $0x70] sm:$0xff]
    %v497 = vld [vmem:[%s3 + $0x78] sm:$0xff]
    %v498 = vld [vmem:[%s3 + $0x80] sm:$0xff]
    %v499 = vld [vmem:[%s3 + $0x88] sm:$0xff]
    %v500 = vld [vmem:[%s3 + $0x90] sm:$0xff]
    %v501 = vld [vmem:[%s3 + $0x98] sm:$0xff]
    %v502 = vld [vmem:[%s3 + $0xa0] sm:$0xff]
    %v503 = vld [vmem:[%s3 + $0xa8] sm:$0xff]
    %v504 = vld [vmem:[%s3 + $0xb0] sm:$0xff]
    %v505 = vld [vmem:[%s3 + $0xb8] sm:$0xff]
    %v506 = vld [vmem:[%s3 + $0xc0] sm:$0xff]
    %v507 = vld [vmem:[%s3 + $0xc8] sm:$0xff]
    %v508 = vld [vmem:[%s3 + $0xd0] sm:$0xff]
    %v509 = vld [vmem:[%s3 + $0xd8] sm:$0xff]
    %v510 = vld [vmem:[%s3 + $0xe0] sm:$0xff]
    %v511 = vld [vmem:[%s3 + $0xe8] sm:$0xff]
    %v512 = vld [vmem:[%s3 + $0xf0] sm:$0xff]
    %v513 = vld [vmem:[%s3 + $0xf8] sm:$0xff]
    %v514 = vld [vmem:[%s4] sm:$0x1]
    %v516 = vlaneseq
    %v517 = vshrl.u32 %v516, 7
    %v518 = vsub.s32 0, %v517
    %v519 = vrot.slane %v514, %v518
    %521 = vmatprep.subr.mxu0 0.0
    %522 = vmatpush1.msra.mxu0 %v497
    %523 = vmatprep.subr.mxu0 0.0
    %524 = vmatpush1.msra.mxu0 %v496
    %525 = vmatprep.subr.mxu0 0.0
    %526 = vmatpush1.msra.mxu0 %v495
    %527 = vmatprep.subr.mxu0 0.0
    %528 = vmatpush1.msra.mxu0 %v494
    %529 = vmatprep.subr.mxu0 0.0
    %530 = vmatpush1.msra.mxu0 %v493
    %531 = vmatprep.subr.mxu0 0.0
    %532 = vmatpush1.msra.mxu0 %v492
    %533 = vmatprep.subr.mxu0 0.0
    %534 = vmatpush1.msra.mxu0 %v491
    %535 = vmatprep.subr.mxu0 0.0
    %536 = vmatpush1.msra.mxu0 %v490
    %537 = vmatprep.subr.mxu0 0.0
    %538 = vmatpush1.msra.mxu0 %v489
    %539 = vmatprep.subr.mxu0 0.0
    %540 = vmatpush1.msra.mxu0 %v488
    %541 = vmatprep.subr.mxu0 0.0
    %542 = vmatpush1.msra.mxu0 %v487
    %543 = vmatprep.subr.mxu0 0.0
    %544 = vmatpush1.msra.mxu0 %v486
    %545 = vmatprep.subr.mxu0 0.0
    %546 = vmatpush1.msra.mxu0 %v485
    %547 = vmatprep.subr.mxu0 0.0
    %548 = vmatpush1.msra.mxu0 %v484
    %549 = vmatprep.subr.mxu0 0.0
    %550 = vmatpush1.msra.mxu0 %v483
    %551 = vmatprep.subr.mxu0 0.0
    %552 = vmatpush1.msra.mxu0 %v482
    %553 = vmatprep.subr.mxu0 0.0
    %554 = vmatpush2.msra.mxu0 %v513
    %555 = vmatprep.subr.mxu0 0.0
    %556 = vmatpush2.msra.mxu0 %v512
    %557 = vmatprep.subr.mxu0 0.0
    %558 = vmatpush2.msra.mxu0 %v511
    %559 = vmatprep.subr.mxu0 0.0
    %560 = vmatpush2.msra.mxu0 %v510
    %561 = vmatprep.subr.mxu0 0.0
    %562 = vmatpush2.msra.mxu0 %v509
    %563 = vmatprep.subr.mxu0 0.0
    %564 = vmatpush2.msra.mxu0 %v508
    %565 = vmatprep.subr.mxu0 0.0
    %566 = vmatpush2.msra.mxu0 %v507
    %567 = vmatprep.subr.mxu0 0.0
    %568 = vmatpush2.msra.mxu0 %v506
    %569 = vmatprep.subr.mxu0 0.0
    %570 = vmatpush2.msra.mxu0 %v505
    %571 = vmatprep.subr.mxu0 0.0
    %572 = vmatpush2.msra.mxu0 %v504
    %573 = vmatprep.subr.mxu0 0.0
    %574 = vmatpush2.msra.mxu0 %v503
    %575 = vmatprep.subr.mxu0 0.0
    %576 = vmatpush2.msra.mxu0 %v502
    %577 = vmatprep.subr.mxu0 0.0
    %578 = vmatpush2.msra.mxu0 %v501
    %579 = vmatprep.subr.mxu0 0.0
    %580 = vmatpush2.msra.mxu0 %v500
    %581 = vmatprep.subr.mxu0 0.0
    %582 = vmatpush2.msra.mxu0 %v499
    %583 = vmatprep.subr.mxu0 0.0
    %584 = vmatpush2.msra.mxu0 %v498
    %585 = vmatprep.mubr.f32.mxu0 %v481
    %586 = vmatmul.mubr.f32.gmra.mxu0 %v480
    %v587 = vpop.f32.mrf.mxu0
    %v588 = vadd.f32 %v519, %v587
    %v589 = vpop.f32.mrf.mxu0
    %590 = vdwg.mxu0
    %v591 = vmax.f32 %v588, 0.0
    %v592 = vld [vmem:[%s5] sm:$0xff]
    %v593 = vld [vmem:[%s5 + $0x8] sm:$0xff]
    %v594 = vld [vmem:[%s5 + $0x10] sm:$0xff]
    %v595 = vld [vmem:[%s5 + $0x18] sm:$0xff]
    %v596 = vld [vmem:[%s6] sm:$0x1]
    %v598 = vlaneseq
    %v599 = vshrl.u32 %v598, 7
    %v600 = vsub.s32 0, %v599
    %v601 = vrot.slane %v596, %v600
    %vm603 = vcmask 261120
    %v605 = vsel %vm603, %v591, 0
    %607 = vmatprep.subr.mxu0 0.0
    %608 = vmatpush1.msra.mxu0 0.0
    %609 = vmatprep.subr.mxu0 0.0
    %610 = vmatpush1.msra.mxu0 0.0
    %611 = vmatprep.subr.mxu0 0.0
    %612 = vmatpush1.msra.mxu0 0.0
    %613 = vmatprep.subr.mxu0 0.0
    %614 = vmatpush1.msra.mxu0 0.0
    %615 = vmatprep.subr.mxu0 0.0
    %616 = vmatpush1.msra.mxu0 0.0
    %617 = vmatprep.subr.mxu0 0.0
    %618 = vmatpush1.msra.mxu0 0.0
    %619 = vmatprep.subr.mxu0 0.0
    %620 = vmatpush1.msra.mxu0 0.0
    %621 = vmatprep.subr.mxu0 0.0
    %622 = vmatpush1.msra.mxu0 0.0
    %623 = vmatprep.subr.mxu0 0.0
    %624 = vmatpush1.msra.mxu0 0.0
    %625 = vmatprep.subr.mxu0 0.0
    %626 = vmatpush1.msra.mxu0 0.0
    %627 = vmatprep.subr.mxu0 0.0
    %628 = vmatpush1.msra.mxu0 0.0
    %629 = vmatprep.subr.mxu0 0.0
    %630 = vmatpush1.msra.mxu0 0.0
    %631 = vmatprep.subr.mxu0 0.0
    %632 = vmatpush1.msra.mxu0 %v595
    %633 = vmatprep.subr.mxu0 0.0
    %634 = vmatpush1.msra.mxu0 %v594
    %635 = vmatprep.subr.mxu0 0.0
    %636 = vmatpush1.msra.mxu0 %v593
    %637 = vmatprep.subr.mxu0 0.0
    %638 = vmatpush1.msra.mxu0 %v592
    %639 = vmatprep.subr.mxu0 0.0
    %640 = vmatpush2.msra.mxu0 0.0
    %641 = vmatprep.subr.mxu0 0.0
    %642 = vmatpush2.msra.mxu0 0.0
    %643 = vmatprep.subr.mxu0 0.0
    %644 = vmatpush2.msra.mxu0 0.0
    %645 = vmatprep.subr.mxu0 0.0
    %646 = vmatpush2.msra.mxu0 0.0
    %647 = vmatprep.subr.mxu0 0.0
    %648 = vmatpush2.msra.mxu0 0.0
    %649 = vmatprep.subr.mxu0 0.0
    %650 = vmatpush2.msra.mxu0 0.0
    %651 = vmatprep.subr.mxu0 0.0
    %652 = vmatpush2.msra.mxu0 0.0
    %653 = vmatprep.subr.mxu0 0.0
    %654 = vmatpush2.msra.mxu0 0.0
    %655 = vmatprep.subr.mxu0 0.0
    %656 = vmatpush2.msra.mxu0 0.0
    %657 = vmatprep.subr.mxu0 0.0
    %658 = vmatpush2.msra.mxu0 0.0
    %659 = vmatprep.subr.mxu0 0.0
    %660 = vmatpush2.msra.mxu0 0.0
    %661 = vmatprep.subr.mxu0 0.0
    %662 = vmatpush2.msra.mxu0 0.0
    %663 = vmatprep.subr.mxu0 0.0
    %664 = vmatpush2.msra.mxu0 0.0
    %665 = vmatprep.subr.mxu0 0.0
    %666 = vmatpush2.msra.mxu0 0.0
    %667 = vmatprep.subr.mxu0 0.0
    %668 = vmatpush2.msra.mxu0 0.0
    %669 = vmatprep.subr.mxu0 0.0
    %670 = vmatpush2.msra.mxu0 0.0
    %671 = vmatprep.mubr.f32.mxu0 0.0
    %672 = vmatmul.mubr.f32.gmra.mxu0 %v605
    %v673 = vpop.f32.mrf.mxu0
    %v674 = vadd.f32 %v601, %v673
    %v675 = vpop.f32.mrf.mxu0
    %676 = vdwg.mxu0
    %vm677 = vcmask 25600
    %678 = vst.msk [vmem:[#allocation5] sm:$0x3] %vm677, %v674
    // Predicated region
    $region34: #{tpu_custom_call.1} parent=1 // pred_check
      _
    $region35: #{tpu_custom_call.1} parent=1 // pred_check_branch
      %680 = sbr.rel (0) target = $region37
    $region36: #{tpu_custom_call.1} parent=1 // pred_region
      %s682 = ssub.s32 32, 32
      %683 = vsyncadd [#allocation4], %s682
      %s685 = sshll.u32 [#allocation5], 4
      %s686 = int_to_ptr.vmem [resolvable:$true] %s685
      %688 = dma.vmem_to_hbm [thread:$0]  %s686, 32, %s7, [#allocation4]
    $region37: #{tpu_custom_call.1} parent=1 // pred_fallthru
      _
    // Predicated region
    $region38: #{tpu_custom_call.1} parent=1 // pred_check
      _
    $region39: #{tpu_custom_call.1} parent=1 // pred_check_branch
      %690 = sbr.rel (0) target = $region41
    $region40: #{tpu_custom_call.1} parent=1 // pred_region
      %691 = dma.done [#allocation4], 32
    $region41: #{tpu_custom_call.1} parent=1 // pred_fallthru
      _
    %692 = vsyncpa [#allocation3], 1
    %693 = vsyncpa [#allocation4], 1

</llo_original>
